<compile_context>
chip_gen: v7x
topology: tpu7x:2x2x1
jax: 0.10.0
libtpu: 0.0.40
codegen_flags: <defaults>
</compile_context>

<pallas_src>
import jax
import jax.numpy as jnp
from jax import lax
from jax.experimental import pallas as pl
from jax.experimental.pallas import tpu as pltpu


_STEP_INPUT_BUDGET = 8 * 1024 * 1024   # target input bytes moved per grid step
_ITEMSIZE = 4                          # float32


def _round_up(x, m):
    return ((x + m - 1) // m) * m


def _round_down(x, m):
    return (x // m) * m


def _cdiv(a, b):
    return (a + b - 1) // b


def _largest_divisor_leq(n, cap):
    cap = max(1, min(n, cap))
    for d in range(cap, 0, -1):
        if n % d == 0:
            return d
    return 1


def _make_kernel(M, tm, m_ragged):
    """Kernel over grid (b, n, k); k (the M/reduction axis) is innermost."""

    def kernel(x_ref, vals_ref, idx_ref):
        k = pl.program_id(2)
        nk = pl.num_programs(2)

        @pl.when(k == 0)
        def _init():
            # Outputs double as running accumulators: their BlockSpec ignores
            # k, so the blocks stay resident in VMEM across the reduction and
            # are written back to HBM only once per (b, n) tile.
            vals_ref[...] = jnp.full_like(vals_ref, -jnp.inf)
            idx_ref[...] = jnp.zeros_like(idx_ref)

        def _process(mask_tail):
            x = x_ref[...]                                       # (tb, tm, tn)
            rows = lax.broadcasted_iota(jnp.int32, x.shape, 1)   # row-in-tile
            if mask_tail:
                # Only reached on the last m-tile when tm does not divide M:
                # rows >= M are uninitialized; -inf can never win the max.
                x = jnp.where(rows < (M - k * tm), x, -jnp.inf)

            tile_max = jnp.max(x, axis=1, keepdims=True)         # (tb, 1, tn)
            # First-occurrence argmax within this tile.
            local_idx = jnp.min(
                jnp.where(x == tile_max, rows, jnp.int32(tm)),
                axis=1, keepdims=True)                           # (tb, 1, tn)
            tile_idx = local_idx + k * tm

            prev_v = vals_ref[...]
            # Strict > keeps the first occurrence across m-tiles.
            take = tile_max > prev_v
            vals_ref[...] = jnp.where(take, tile_max, prev_v)
            idx_ref[...] = jnp.where(take, tile_idx, idx_ref[...])

        if m_ragged:
            # Pay the tail-mask ops only on the one grid step that needs them.
            @pl.when(k == nk - 1)
            def _tail():
                _process(True)

            @pl.when(k < nk - 1)
            def _body():
                _process(False)
        else:
            _process(False)

    return kernel


def reduce_max_keepdim_return_both(a, *, tb=None, tm=None, tn=None):
    """a: (B, M, N) float32 -> (values (B, 1, N) f32, indices (B, 1, N) i32)."""
    B, M, N = a.shape
    tm_auto = tm is None

    # ---- lane (N) tile: full N when small, else a 512-wide multiple of 128.
    if tn is None:
        tn = N if N <= 512 else 512
    else:
        tn = N if tn >= N else max(128, _round_up(tn, 128))

    # ---- reduction (M) tile: whole M if it fits the per-step budget.
    if tm_auto:
        if M * tn * _ITEMSIZE <= _STEP_INPUT_BUDGET:
            tm = M
        else:
            tm = max(8, _round_down(_STEP_INPUT_BUDGET // (tn * _ITEMSIZE), 8))
    else:
        tm = M if tm >= M else max(8, _round_up(tm, 8))
        if tm >= M:
            tm = M

    # ---- batch (B) tile: a divisor of B (no padding), filling the budget.
    if tb is None:
        if tm == M:
            tb = _largest_divisor_leq(
                B, max(1, _STEP_INPUT_BUDGET // (M * tn * _ITEMSIZE)))
        else:
            tb = 1
    else:
        tb = _largest_divisor_leq(B, tb)

    # ---- ensure enough blocks on the two "parallel" grid axes to feed both
    #      v7x TensorCores (no effect on single-TC v5e/v6e); split B first.
    while (B // tb) * _cdiv(N, tn) < 4:
        if tb > 1:
            tb = _largest_divisor_leq(B, tb - 1)
        elif tn > 128:
            new_tn = max(128, _round_up(tn // 2, 128))
            if new_tn >= tn:
                break
            tn = new_tn
        else:
            break

    # Re-fill the per-step budget along M if tn was shrunk above.
    if tm_auto and tm < M:
        tm = max(8, _round_down(_STEP_INPUT_BUDGET // (tn * _ITEMSIZE), 8))
        if tm >= M:
            tm = M

    grid = (B // tb, _cdiv(N, tn), _cdiv(M, tm))   # reduction axis last
    m_ragged = (M % tm) != 0

    step_bytes = tb * tm * tn * _ITEMSIZE
    vmem_limit = max(32 * 1024 * 1024, 2 * step_bytes + 2 * 1024 * 1024)

    vals, idx = pl.pallas_call(
        _make_kernel(M, tm, m_ragged),
        out_shape=(
            jax.ShapeDtypeStruct((B, 1, N), a.dtype),
            jax.ShapeDtypeStruct((B, 1, N), jnp.int32),
        ),
        grid=grid,
        in_specs=[pl.BlockSpec((tb, tm, tn), lambda b, n, k: (b, k, n))],
        out_specs=(
            pl.BlockSpec((tb, 1, tn), lambda b, n, k: (b, 0, n)),
            pl.BlockSpec((tb, 1, tn), lambda b, n, k: (b, 0, n)),
        ),
        compiler_params=pltpu.CompilerParams(
            dimension_semantics=("parallel", "parallel", "arbitrary"),
            vmem_limit_bytes=vmem_limit,
        ),
    )(a)
    return vals, idx


if __name__ == "__main__":
    root = jax.random.PRNGKey(0)
    key1, key2 = jax.random.split(root)

    def ref(a):
        v = jnp.max(a, axis=1, keepdims=True)
        i = jnp.argmax(a, axis=1)[:, None, :].astype(jnp.int32)
        return v, i

    # 1) Small aligned case with automatic tiling (exercises megacore-driven
    #    tb/tn shrinking and the ragged-N output writeback).
    B, M, N = 2, 8, 384
    a1 = jax.random.normal(key1, (B, M, N), dtype=jnp.float32)
    v1, i1 = reduce_max_keepdim_return_both(a1)
    jax.block_until_ready((v1, i1))
    rv1, ri1 = ref(a1)
    assert v1.shape == (B, 1, N) and i1.shape == (B, 1, N)
    assert jnp.array_equal(v1, rv1)
    assert jnp.array_equal(i1, ri1)

    # 2) Ragged M and N with forced small tiles: exercises M tiling with the
    #    pl.when-guarded tail mask, N tiling with a partial last block, and
    #    cross-m-tile running max/index merging.  A duplicated row checks
    #    first-occurrence tie-breaking across m-tiles.
    B2, M2, N2 = 3, 20, 200
    a2 = jax.random.normal(key2, (B2, M2, N2), dtype=jnp.float32)
    a2 = a2.at[:, 13, :].set(a2[:, 4, :])   # ties between m-tiles (tm=8)
    v2, i2 = reduce_max_keepdim_return_both(a2, tb=2, tm=8, tn=128)
    jax.block_until_ready((v2, i2))
    rv2, ri2 = ref(a2)
    assert v2.shape == (B2, 1, N2) and i2.shape == (B2, 1, N2)
    assert jnp.array_equal(v2, rv2)
    assert jnp.array_equal(i2, ri2)

    # TODO(synk): indices are int32 (torch returns int64); values identical
    #             for any M that fits int32.
    # TODO(synk): exact aten.max NaN value/index propagation is not
    #             replicated (dropped per perf review); NaN-free inputs match
    #             PyTorch exactly.
    print("KERNEL_OK")
</pallas_src>

<mosaic_0001>
module attributes {stable_mosaic.version = 11 : i64} {
  func.func @kernel(%arg0: i32, %arg1: i32, %arg2: i32, %arg3: memref<1x8x256xf32, #tpu.memory_space<vmem>>, %arg4: memref<1x1x256xf32, #tpu.memory_space<vmem>>, %arg5: memref<1x1x256xi32, #tpu.memory_space<vmem>>) attributes {dimension_semantics = [#tpu.dimension_semantics<parallel>, #tpu.dimension_semantics<parallel>, #tpu.dimension_semantics<arbitrary>], iteration_bounds = array<i64: 2, 2, 1>, scalar_prefetch = 0 : i64, scratch_operands = 0 : i64, tpu.core_type = #tpu.core_type<tc>, window_params = [{transform_indices = @transform_0, window_bounds = array<i64: 1, 8, 256>}, {transform_indices = @transform_1, window_bounds = array<i64: 1, 1, 256>}, {transform_indices = @transform_2, window_bounds = array<i64: 1, 1, 256>}]} {
    %c0_i32 = arith.constant 0 : i32
    %0 = arith.cmpi eq, %arg2, %c0_i32 : i32
    %1 = arith.extui %0 : i1 to i32
    %c0_i32_0 = arith.constant 0 : i32
    %2 = arith.cmpi ne, %1, %c0_i32_0 : i32
    scf.if %2 {
      %cst_17 = arith.constant 0xFF800000 : f32
      %23 = vector.broadcast %cst_17 : f32 to vector<1x1x256xf32>
      %c0_18 = arith.constant 0 : index
      %c0_19 = arith.constant 0 : index
      %c0_20 = arith.constant 0 : index
      %24 = vector.load %arg4[%c0_18, %c0_19, %c0_20] : memref<1x1x256xf32, #tpu.memory_space<vmem>>, vector<1x1x256xf32>
      tpu.vector_store %arg4[%c0_18, %c0_19, %c0_20], %23 {strides = array<i32>} : memref<1x1x256xf32, #tpu.memory_space<vmem>>, vector<1x1x256xf32>,
      %c0_i32_21 = arith.constant 0 : i32
      %25 = vector.broadcast %c0_i32_21 : i32 to vector<1x1x256xi32>
      %c0_22 = arith.constant 0 : index
      %c0_23 = arith.constant 0 : index
      %c0_24 = arith.constant 0 : index
      %26 = vector.load %arg5[%c0_22, %c0_23, %c0_24] : memref<1x1x256xi32, #tpu.memory_space<vmem>>, vector<1x1x256xi32>
      tpu.vector_store %arg5[%c0_22, %c0_23, %c0_24], %25 {strides = array<i32>} : memref<1x1x256xi32, #tpu.memory_space<vmem>>, vector<1x1x256xi32>,
    } else {
    }
    %c0 = arith.constant 0 : index
    %c0_1 = arith.constant 0 : index
    %c0_2 = arith.constant 0 : index
    %3 = vector.load %arg3[%c0, %c0_1, %c0_2] : memref<1x8x256xf32, #tpu.memory_space<vmem>>, vector<1x8x256xf32>
    %4 = tpu.iota {dimensions = array<i32: 1>} : vector<1x8x256xi32>
    %cst = arith.constant dense<0xFF800000> : vector<1x256xf32>
    %5 = vector.multi_reduction <maximumf>, %3, %cst [1] : vector<1x8x256xf32> to vector<1x256xf32>
    %6 = vector.shape_cast %5 : vector<1x256xf32> to vector<1x1x256xf32>
    %7 = vector.broadcast %6 : vector<1x1x256xf32> to vector<1x8x256xf32>
    %8 = arith.cmpf oeq, %3, %7 : vector<1x8x256xf32>
    %c8_i32 = arith.constant 8 : i32
    %9 = vector.broadcast %c8_i32 : i32 to vector<1x8x256xi32>
    %10 = arith.select %8, %4, %9 : vector<1x8x256xi1>, vector<1x8x256xi32>
    %cst_3 = arith.constant dense<2147483647> : vector<1x256xi32>
    %11 = vector.multi_reduction <minsi>, %10, %cst_3 [1] : vector<1x8x256xi32> to vector<1x256xi32>
    %12 = vector.shape_cast %11 : vector<1x256xi32> to vector<1x1x256xi32>
    %c8_i32_4 = arith.constant 8 : i32
    %13 = arith.muli %arg2, %c8_i32_4 : i32
    %14 = vector.broadcast %13 : i32 to vector<1x1x256xi32>
    %15 = arith.addi %12, %14 : vector<1x1x256xi32>
    %c0_5 = arith.constant 0 : index
    %c0_6 = arith.constant 0 : index
    %c0_7 = arith.constant 0 : index
    %16 = vector.load %arg4[%c0_5, %c0_6, %c0_7] : memref<1x1x256xf32, #tpu.memory_space<vmem>>, vector<1x1x256xf32>
    %17 = arith.cmpf ogt, %6, %16 : vector<1x1x256xf32>
    %18 = arith.select %17, %6, %16 : vector<1x1x256xi1>, vector<1x1x256xf32>
    %c0_8 = arith.constant 0 : index
    %c0_9 = arith.constant 0 : index
    %c0_10 = arith.constant 0 : index
    %19 = vector.load %arg4[%c0_8, %c0_9, %c0_10] : memref<1x1x256xf32, #tpu.memory_space<vmem>>, vector<1x1x256xf32>
    tpu.vector_store %arg4[%c0_8, %c0_9, %c0_10], %18 {strides = array<i32>} : memref<1x1x256xf32, #tpu.memory_space<vmem>>, vector<1x1x256xf32>,
    %c0_11 = arith.constant 0 : index
    %c0_12 = arith.constant 0 : index
    %c0_13 = arith.constant 0 : index
    %20 = vector.load %arg5[%c0_11, %c0_12, %c0_13] : memref<1x1x256xi32, #tpu.memory_space<vmem>>, vector<1x1x256xi32>
    %21 = arith.select %17, %15, %20 : vector<1x1x256xi1>, vector<1x1x256xi32>
    %c0_14 = arith.constant 0 : index
    %c0_15 = arith.constant 0 : index
    %c0_16 = arith.constant 0 : index
    %22 = vector.load %arg5[%c0_14, %c0_15, %c0_16] : memref<1x1x256xi32, #tpu.memory_space<vmem>>, vector<1x1x256xi32>
    tpu.vector_store %arg5[%c0_14, %c0_15, %c0_16], %21 {strides = array<i32>} : memref<1x1x256xi32, #tpu.memory_space<vmem>>, vector<1x1x256xi32>,
    return
  }
  func.func @transform_0(%arg0: i32, %arg1: i32, %arg2: i32) -> (i32, i32, i32) {
    %c0_i32 = arith.constant 0 : i32
    return %arg0, %arg2, %arg1 : i32, i32, i32
  }
  func.func @transform_1(%arg0: i32, %arg1: i32, %arg2: i32) -> (i32, i32, i32) {
    %c0_i32 = arith.constant 0 : i32
    %c0_i32_0 = arith.constant 0 : i32
    return %arg0, %c0_i32, %arg1 : i32, i32, i32
  }
  func.func @transform_2(%arg0: i32, %arg1: i32, %arg2: i32) -> (i32, i32, i32) {
    %c0_i32 = arith.constant 0 : i32
    %c0_i32_0 = arith.constant 0 : i32
    return %arg0, %c0_i32, %arg1 : i32, i32, i32
  }
}

</mosaic_0001>

<llo_original>
// kernel: tpu_custom_call.1
$region0: #{tpu_custom_call.1}
  #allocation0 [shape = 'u32[]', space=smem, size = 0x4, offset = 0x4, fixed_abs, tag = 'smem constant byte address 0x4 - core index']
  #allocation1 [shape = 'u32[144,128]{1,0:T(1,128)}', space=vmem, size = 0x12000, scoped, tag = 'internal scratch']
  %s0 = inlined_call_operand.hbm [shape: f32[2,8,384], index: 0, kind: input, shape index: {}]
  %s1 = inlined_call_operand.hbm [shape: f32[2,1,384], index: 1, kind: output, shape index: {0}]
  %s2 = inlined_call_operand.hbm [shape: s32[2,1,384], index: 2, kind: output, shape index: {1}]
  %3 = xla_tuple %s1, %s2
  %s4 = sld [smem:[#allocation0]]
  $region53: #{tpu_custom_call.1} parent=0
    _
  %s6 = ssub.s32 1, %s4
  %s7 = scalar_select 0, %s6, %s4
  $region1: #{tpu_custom_call.1} parent=0
    #allocation2 [shape = 'u8[16384]{0}', space=vmem, size = 0x4000, scoped, tag = 'input window, operand 0']
    #allocation3 [shape = 's32[2]{0}', space=sflag, size = 0x8, scoped, tag = 'scoped memory for tpu_custom_call.1']
    #allocation4 [shape = 's32[2]{0}', space=sflag, size = 0x8, scoped, tag = 'scoped memory for tpu_custom_call.1']
    #allocation5 [shape = 'u8[2048]{0}', space=vmem, size = 0x800, scoped, tag = 'output window, operand 0']
    #allocation6 [shape = 'u8[2048]{0}', space=vmem, size = 0x800, scoped, tag = 'output window, operand 1']
    #allocation7 [shape = 's32[2]{0}', space=sflag, size = 0x8, scoped, tag = 'scoped memory for tpu_custom_call.1']
    %8 = vsyncpa [#allocation3], 0
    %s9 = scalar_lea.sflag [#allocation3], 1
    %10 = vsyncpa %s9, 0
    %11 = vsyncpa [#allocation4], 0
    %s12 = scalar_lea.sflag [#allocation4], 1
    %13 = vsyncpa %s12, 0
    %14 = vsyncpa [#allocation7], 0
    %s15 = scalar_lea.sflag [#allocation7], 1
    %16 = vsyncpa %s15, 0
    loop: start=0, step=1, limit=6
    $region2: #{tpu_custom_call.1} parent=1 // loop_pre_header
      _
    $region3: #{tpu_custom_call.1} parent=1 // loop_header
      %s18 = sphi 0, %s22
      %p19 = scmp.ge.s32.totalorder %s18, 6
      %s25 = sphi 0, %s44
      %s26 = sphi 0, %s40
      %s27 = sphi 0, %s36
      %s28 = sphi 0, %s25
      %s29 = sphi 0, %s26
      %s30 = sphi 0, %s27
      %s31 = sphi 0, %s28
      %s32 = sphi 0, %s29
      %s33 = sphi 0, %s30
      %s51 = sphi 0, %s53
      %s54 = sphi 0, %s51
      %s55 = sphi 0, %s54
      %s71 = sphi 0, %s55
      %s79 = sphi 0, %s81
      %s82 = sphi 0, %s79
      %s83 = sphi 0, %s82
      %s99 = sphi 0, %s83
      %s107 = sphi 0, %s109
      %s110 = sphi 0, %s107
      %s111 = sphi 0, %s110
      %s127 = sphi 0, %s111
    $region4: #{tpu_custom_call.1} parent=1 // loop_header_branch
      %21 = sbr.rel (%p19) target = $region8
    $region5: #{tpu_custom_call.1} parent=1 // loop_body
      %s23 = ssub.s32 %s18, 1
      %s24 = ssub.s32 %s18, 2
      %s34 = sadd.s32 1, %s27
      %p35 = scmp.ge.s32.totalorder %s34, 1
      %s36 = scalar_select %p35, 0, %s34
      %s37 = sadd.s32 1, %s26
      %s38 = scalar_select %p35, %s37, %s26
      %p39 = scmp.ge.s32.totalorder %s38, 2
      %s40 = scalar_select %p39, 0, %s38
      %s41 = sadd.s32 1, %s25
      %s42 = scalar_select %p39, %s41, %s25
      %p43 = scmp.ge.s32.totalorder %s42, 2
      %s44 = scalar_select %p43, 0, %s42
      %s45 = ssub.s32 %s25, %s44
      %s46 = ssub.s32 %s27, %s36
      %s47 = sor.u32 %s45, %s46
      %s48 = ssub.s32 %s26, %s40
      %s49 = sor.u32 %s47, %s48
      %p50 = scmp.eq.s32.totalorder %s49, 0
      %s52 = sadd.s32 %s51, 1
      %s53 = scalar_select %p50, %s51, %s52
      %p56 = pneg %p50
      %p57 = scmp.eq.s32.totalorder %s18, 3
      %p58 = por %p56, %p57
      %p59 = scmp.ne.s32.totalorder %s51, %s54
      %p60 = scmp.eq.s32.totalorder %s18, 0
      %p61 = por %p59, %p60
      %p62 = scmp.ne.s32.totalorder %s51, %s54
      %p63 = scmp.eq.s32.totalorder %s23, 3
      %p64 = por %p62, %p63
      %p65 = scmp.ne.s32.totalorder %s54, %s55
      %p66 = scmp.eq.s32.totalorder %s23, 0
      %p67 = por %p65, %p66
      %p68 = scmp.ne.s32.totalorder %s54, %s55
      %p69 = scmp.eq.s32.totalorder %s24, 3
      %p70 = por %p68, %p69
      %p72 = scmp.ne.s32.totalorder %s55, %s71
      %p73 = scmp.eq.s32.totalorder %s24, 0
      %p74 = por %p72, %p73
      %s75 = ssub.s32 %s25, %s44
      %s76 = ssub.s32 %s26, %s40
      %s77 = sor.u32 %s75, %s76
      %p78 = scmp.eq.s32.totalorder %s77, 0
      %s80 = sadd.s32 %s79, 1
      %s81 = scalar_select %p78, %s79, %s80
      %p84 = pneg %p78
      %p85 = scmp.eq.s32.totalorder %s18, 3
      %p86 = por %p84, %p85
      %p87 = scmp.ne.s32.totalorder %s79, %s82
      %p88 = scmp.eq.s32.totalorder %s18, 0
      %p89 = por %p87, %p88
      %p90 = scmp.ne.s32.totalorder %s79, %s82
      %p91 = scmp.eq.s32.totalorder %s23, 3
      %p92 = por %p90, %p91
      %p93 = scmp.ne.s32.totalorder %s82, %s83
      %p94 = scmp.eq.s32.totalorder %s23, 0
      %p95 = por %p93, %p94
      %p96 = scmp.ne.s32.totalorder %s82, %s83
      %p97 = scmp.eq.s32.totalorder %s24, 3
      %p98 = por %p96, %p97
      %p100 = scmp.ne.s32.totalorder %s83, %s99
      %p101 = scmp.eq.s32.totalorder %s24, 0
      %p102 = por %p100, %p101
      %s103 = ssub.s32 %s25, %s44
      %s104 = ssub.s32 %s26, %s40
      %s105 = sor.u32 %s103, %s104
      %p106 = scmp.eq.s32.totalorder %s105, 0
      %s108 = sadd.s32 %s107, 1
      %s109 = scalar_select %p106, %s107, %s108
      %p112 = pneg %p106
      %p113 = scmp.eq.s32.totalorder %s18, 3
      %p114 = por %p112, %p113
      %p115 = scmp.ne.s32.totalorder %s107, %s110
      %p116 = scmp.eq.s32.totalorder %s18, 0
      %p117 = por %p115, %p116
      %p118 = scmp.ne.s32.totalorder %s107, %s110
      %p119 = scmp.eq.s32.totalorder %s23, 3
      %p120 = por %p118, %p119
      %p121 = scmp.ne.s32.totalorder %s110, %s111
      %p122 = scmp.eq.s32.totalorder %s23, 0
      %p123 = por %p121, %p122
      %p124 = scmp.ne.s32.totalorder %s110, %s111
      %p125 = scmp.eq.s32.totalorder %s24, 3
      %p126 = por %p124, %p125
      %p128 = scmp.ne.s32.totalorder %s111, %s127
      %p129 = scmp.eq.s32.totalorder %s24, 0
      %p130 = por %p128, %p129
      %p131 = scmp.le.s32.totalorder 1, %s18
      %p132 = scmp.lt.s32.totalorder %s18, 5
      %p133 = pnand %p131, %p132
      %p134 = pneg %p133
      // Predicated region
      $region9: #{tpu_custom_call.1} parent=5 // pred_check
        _
      $region10: #{tpu_custom_call.1} parent=5 // pred_check_branch
        %136 = sbr.rel (%p133) target = $region12
      $region11: #{tpu_custom_call.1} parent=5 // pred_region
        %s137 = ssub.s32 %s18, 1
      $region12: #{tpu_custom_call.1} parent=5 // pred_fallthru
        _
      %p138 = scmp.lt.s32.totalorder %s18, 4
      // Predicated region
      $region13: #{tpu_custom_call.1} parent=5 // pred_check
        %p139 = pneg %p138
      $region14: #{tpu_custom_call.1} parent=5 // pred_check_branch
        %141 = sbr.rel (%p139) target = $region16
      $region15: #{tpu_custom_call.1} parent=5 // pred_region
        // Predicated region
        $region17: #{tpu_custom_call.1} parent=15 // pred_check
          %p142 = pneg %p61
        $region18: #{tpu_custom_call.1} parent=15 // pred_check_branch
          %144 = sbr.rel (%p142) target = $region20
        $region19: #{tpu_custom_call.1} parent=15 // pred_region
          %s145 = sand.u32 %s51, 1
          %s146 = scalar_lea.sflag [#allocation3], %s145
          %s147 = sand.u32 %s51, 1
          %s148 = smul.addr %s147, 16
          %s149 = scalar_lea.vmem [#allocation2], %s148
          %s150 = smul.u32 2, %s26
          %s151 = ssub.s32 3, %s150
          %p152 = scmp.lt.s32.totalorder %s151, 2
          %s153 = scalar_select %p152, %s151, 2
          %s154 = smul.u32 128, %s153
          %s156 = ssub.s32 256, %s154
          %157 = vsyncadd %s146, %s156
          %p158 = scmp.ne.s32.totalorder 0, %s154
          %s159 = smul.addr %s27, 3
          %s160 = sadd.s32 %s150, %s159
          %s161 = smul.addr %s25, 3
          %s162 = sadd.s32 %s160, %s161
          %s163 = smul.addr %s162, 128
          %s164 = scalar_lea.hbm %s0, %s163
          %s165 = smul.u32 %s153, 8
          %s166 = sshll.u32 %s165, 4
          %s167 = sshll.u32 %s149, 4
          %s168 = int_to_ptr.vmem [resolvable:$true] %s167
          %170 = dma.hbm_to_vmem [thread:$0]  (%p158), %s164, %s166, %s168, %s146
        $region20: #{tpu_custom_call.1} parent=15 // pred_fallthru
          _
      $region16: #{tpu_custom_call.1} parent=5 // pred_fallthru
        _
      %p171 = scmp.le.s32.totalorder 1, %s18
      %p172 = scmp.lt.s32.totalorder %s18, 5
      %p173 = pnand %p171, %p172
      %p174 = pneg %p173
      // Predicated region
      $region21: #{tpu_custom_call.1} parent=5 // pred_check
        _
      $region22: #{tpu_custom_call.1} parent=5 // pred_check_branch
        %176 = sbr.rel (%p173) target = $region24
      $region23: #{tpu_custom_call.1} parent=5 // pred_region
        %s177 = ssub.s32 %s18, 1
        %s178 = sand.u32 %s54, 1
        %s179 = scalar_lea.sflag [#allocation3], %s178
        %s180 = sand.u32 %s54, 1
        %s181 = smul.addr %s180, 16
        %s182 = scalar_lea.vmem [#allocation2], %s181
        // Predicated region
        $region25: #{tpu_custom_call.1} parent=23 // pred_check
          %p183 = pneg %p67
        $region26: #{tpu_custom_call.1} parent=23 // pred_check_branch
          %185 = sbr.rel (%p183) target = $region28
        $region27: #{tpu_custom_call.1} parent=23 // pred_region
          %186 = dma.done %s179, 256
        $region28: #{tpu_custom_call.1} parent=23 // pred_fallthru
          _
        %s187 = sand.u32 %s54, 1
        %s188 = scalar_lea.sflag [#allocation3], %s187
        %s189 = sand.u32 %s54, 1
        %s190 = smul.addr %s189, 16
        %s191 = scalar_lea.vmem [#allocation2], %s190
        %p192 = pneg %p67
        %p193 = pneg %p64
        %p194 = pneg %p95
        %p195 = pneg %p92
        %s196 = sand.u32 %s82, 1
        %s197 = scalar_lea.sflag [#allocation4], %s196
        %s198 = sand.u32 %s82, 1
        %s199 = smul.addr %s198, 2
        %s200 = scalar_lea.vmem [#allocation5], %s199
        %p201 = pneg %p123
        %p202 = pneg %p120
        %s203 = sand.u32 %s110, 1
        %s204 = scalar_lea.sflag [#allocation7], %s203
        %s205 = sand.u32 %s110, 1
        %s206 = smul.addr %s205, 2
        %s207 = scalar_lea.vmem [#allocation6], %s206
        %s208 = smul.u32 2, %s29
        %s209 = ssub.s32 3, %s208
        %p210 = scmp.lt.s32.totalorder %s209, 2
        %s211 = scalar_select %p210, %s209, 2
        %s212 = smul.u32 128, %s211
        %s213 = smul.u32 2, %s29
        %s214 = ssub.s32 3, %s213
        %p215 = scmp.lt.s32.totalorder %s214, 2
        %s216 = scalar_select %p215, %s214, 2
        %s217 = smul.u32 16, %s216
        %s218 = smul.u32 2, %s29
        %s219 = ssub.s32 3, %s218
        %p220 = scmp.lt.s32.totalorder %s219, 2
        %s221 = scalar_select %p220, %s219, 2
        %s222 = smul.u32 16, %s221
        %p223 = scmp.eq.s32.totalorder %s30, 0
        // Predicated region
        $region29: #{tpu_custom_call.1} parent=23 // pred_check
          %p224 = pneg %p223
        $region30: #{tpu_custom_call.1} parent=23 // pred_check_branch
          %226 = sbr.rel (%p224) target = $region32
        $region31: #{tpu_custom_call.1} parent=23 // pred_region
          %v227 = vlaneseq
          %vm228 = vcmp.ge.s32.totalorder %v227, 0
          %vm229 = vcmp.lt.s32.totalorder %v227, 256
          %vm230 = vmand %vm228, %vm229
          %231 = vst.msk [vmem:[%s200] sm:$0x3] %vm230, -inf
          %232 = vst.msk [vmem:[%s207] sm:$0x3] %vm230, 0
        $region32: #{tpu_custom_call.1} parent=23 // pred_fallthru
          _
        %v233 = vld [vmem:[%s182] sm:$0xff]
        %v234 = vld [vmem:[%s182 + $0x8] sm:$0xff]
        %v235 = vlaneseq
        %v236 = vshrl.u32 %v235, 7
        %v237 = vrot.slane %v233, 4
        %v238 = vmax.f32 %v233, %v237
        %v239 = vrot.slane %v238, 2
        %v240 = vmax.f32 %v238, %v239
        %v241 = vrot.slane %v240, 1
        %v242 = vmax.f32 %v240, %v241
        %v243 = vrot.slane %v234, 4
        %v244 = vmax.f32 %v234, %v243
        %v245 = vrot.slane %v244, 2
        %v246 = vmax.f32 %v244, %v245
        %v247 = vrot.slane %v246, 1
        %v248 = vmax.f32 %v246, %v247
        %vm249 = vcmp.eq.f32.partialorder %v233, %v242
        %vm250 = vcmp.eq.f32.partialorder %v234, %v248
        %v251 = vsel %vm249, %v236, 8
        %v252 = vsel %vm250, %v236, 8
        %v253 = vrot.slane %v251, 4
        %vm254 = vcmp.lt.s32.totalorder %v251, %v253
        %v255 = vsel %vm254, %v251, %v253
        %v256 = vrot.slane %v255, 2
        %vm257 = vcmp.lt.s32.totalorder %v255, %v256
        %v258 = vsel %vm257, %v255, %v256
        %v259 = vrot.slane %v258, 1
        %vm260 = vcmp.lt.s32.totalorder %v258, %v259
        %v261 = vsel %vm260, %v258, %v259
        %v262 = vrot.slane %v252, 4
        %vm263 = vcmp.lt.s32.totalorder %v252, %v262
        %v264 = vsel %vm263, %v252, %v262
        %v265 = vrot.slane %v264, 2
        %vm266 = vcmp.lt.s32.totalorder %v264, %v265
        %v267 = vsel %vm266, %v264, %v265
        %v268 = vrot.slane %v267, 1
        %vm269 = vcmp.lt.s32.totalorder %v267, %v268
        %v270 = vsel %vm269, %v267, %v268
        %s271 = smul.u32 %s30, 8
        %v272 = vstv %s271
        %v273 = vadd.s32 %v261, %v272
        %v274 = vadd.s32 %v270, %v272
        %v275 = vld [vmem:[%s200] sm:$0x3]
        %v277 = vlaneseq
        %v278 = vshrl.u32 %v277, 7
        %v279 = vsub.s32 0, %v278
        %v280 = vrot.slane %v275, %v279
        %v281 = vlaneseq
        %v282 = vshrl.u32 %v281, 7
        %v283 = vsub.s32 1, %v282
        %v284 = vrot.slane %v275, %v283
        %vm287 = vcmp.gt.f32.partialorder %v242, %v280
        %vm288 = vcmp.gt.f32.partialorder %v248, %v284
        %v289 = vsel %vm287, %v242, %v280
        %v290 = vsel %vm288, %v248, %v284
        %v293 = vcombine.low %v289, %v290
        %v295 = vunpack.c.l.s4 1966171168
        %v296 = vunpack.c.0.s8 %v295
        %v297 = vlaneseq
        %v298 = vshrl.u32 %v297, 7
        %v299 = vsub.s32 %v296, %v298
        %v300 = vrot.slane %v293, %v299
        %v302 = vunpack.c.l.s4 1966171168
        %v303 = vunpack.c.0.s8 %v302
        %v304 = vlaneseq
        %v305 = vshrl.u32 %v304, 7
        %v306 = vsub.s32 %v303, %v305
        %v307 = vrot.slane %v300, %v306
        %v309 = vlaneseq
        %vm310 = vcmp.ge.s32.totalorder %v309, 0
        %vm311 = vcmp.lt.s32.totalorder %v309, 256
        %vm312 = vmand %vm310, %vm311
        %313 = vst.msk [vmem:[%s200] sm:$0x3] %vm312, %v307
        %v314 = vld [vmem:[%s207] sm:$0x3]
        %v315 = vlaneseq
        %v316 = vshrl.u32 %v315, 7
        %v317 = vsub.s32 0, %v316
        %v318 = vrot.slane %v314, %v317
        %v319 = vlaneseq
        %v320 = vshrl.u32 %v319, 7
        %v321 = vsub.s32 1, %v320
        %v322 = vrot.slane %v314, %v321
        %v323 = vsel %vm287, %v273, %v318
        %v324 = vsel %vm288, %v274, %v322
        %v325 = vcombine.low %v323, %v324
        %v327 = vunpack.c.l.s4 1966171168
        %v328 = vunpack.c.0.s8 %v327
        %v329 = vlaneseq
        %v330 = vshrl.u32 %v329, 7
        %v331 = vsub.s32 %v328, %v330
        %v332 = vrot.slane %v325, %v331
        %v334 = vunpack.c.l.s4 1966171168
        %v335 = vunpack.c.0.s8 %v334
        %v336 = vlaneseq
        %v337 = vshrl.u32 %v336, 7
        %v338 = vsub.s32 %v335, %v337
        %v339 = vrot.slane %v332, %v338
        %340 = vst.msk [vmem:[%s207] sm:$0x3] %vm312, %v339
        %s341 = sand.u32 %s82, 1
        %s342 = scalar_lea.sflag [#allocation4], %s341
        %s343 = sand.u32 %s82, 1
        %s344 = smul.addr %s343, 2
        %s345 = scalar_lea.vmem [#allocation5], %s344
        %s346 = sand.u32 %s110, 1
        %s347 = scalar_lea.sflag [#allocation7], %s346
        %s348 = sand.u32 %s110, 1
        %s349 = smul.addr %s348, 2
        %s350 = scalar_lea.vmem [#allocation6], %s349
        // Predicated region
        $region33: #{tpu_custom_call.1} parent=23 // pred_check
          %p351 = pneg %p92
        $region34: #{tpu_custom_call.1} parent=23 // pred_check_branch
          %353 = sbr.rel (%p351) target = $region36
        $region35: #{tpu_custom_call.1} parent=23 // pred_region
          %s354 = smul.u32 2, %s29
          %s355 = ssub.s32 3, %s354
          %p356 = scmp.lt.s32.totalorder %s355, 2
          %s357 = scalar_select %p356, %s355, 2
          %s358 = smul.u32 16, %s357
          %s360 = ssub.s32 32, %s358
          %361 = vsyncadd %s342, %s360
          %p362 = scmp.ne.s32.totalorder 0, %s358
          %s363 = smul.addr %s28, 3
          %s364 = sadd.s32 %s354, %s363
          %s365 = smul.addr %s364, 16
          %s366 = scalar_lea.hbm %s1, %s365
          %s367 = sshll.u32 %s357, 4
          %s368 = sshll.u32 %s345, 4
          %s369 = int_to_ptr.vmem [resolvable:$true] %s368
          %371 = dma.vmem_to_hbm [thread:$0]  (%p362), %s369, %s367, %s366, %s342
        $region36: #{tpu_custom_call.1} parent=23 // pred_fallthru
          _
        // Predicated region
        $region37: #{tpu_custom_call.1} parent=23 // pred_check
          %p372 = pneg %p120
        $region38: #{tpu_custom_call.1} parent=23 // pred_check_branch
          %374 = sbr.rel (%p372) target = $region40
        $region39: #{tpu_custom_call.1} parent=23 // pred_region
          %s375 = smul.u32 2, %s29
          %s376 = ssub.s32 3, %s375
          %p377 = scmp.lt.s32.totalorder %s376, 2
          %s378 = scalar_select %p377, %s376, 2
          %s379 = smul.u32 16, %s378
          %s381 = ssub.s32 32, %s379
          %382 = vsyncadd %s347, %s381
          %p383 = scmp.ne.s32.totalorder 0, %s379
          %s384 = smul.addr %s28, 3
          %s385 = sadd.s32 %s375, %s384
          %s386 = smul.addr %s385, 16
          %s387 = scalar_lea.hbm %s2, %s386
          %s388 = sshll.u32 %s378, 4
          %s389 = sshll.u32 %s350, 4
          %s390 = int_to_ptr.vmem [resolvable:$true] %s389
          %392 = dma.vmem_to_hbm [thread:$0]  (%p383), %s390, %s388, %s387, %s347
        $region40: #{tpu_custom_call.1} parent=23 // pred_fallthru
          _
      $region24: #{tpu_custom_call.1} parent=5 // pred_fallthru
        _
      %p393 = scmp.le.s32.totalorder 2, %s18
      // Predicated region
      $region41: #{tpu_custom_call.1} parent=5 // pred_check
        %p394 = pneg %p393
      $region42: #{tpu_custom_call.1} parent=5 // pred_check_branch
        %396 = sbr.rel (%p394) target = $region44
      $region43: #{tpu_custom_call.1} parent=5 // pred_region
        %s397 = ssub.s32 %s18, 2
        // Predicated region
        $region45: #{tpu_custom_call.1} parent=43 // pred_check
          %p398 = pneg %p98
        $region46: #{tpu_custom_call.1} parent=43 // pred_check_branch
          %400 = sbr.rel (%p398) target = $region48
        $region47: #{tpu_custom_call.1} parent=43 // pred_region
          %s401 = sand.u32 %s83, 1
          %s402 = scalar_lea.sflag [#allocation4], %s401
          %s403 = sand.u32 %s83, 1
          %s404 = smul.addr %s403, 2
          %s405 = scalar_lea.vmem [#allocation5], %s404
          %406 = dma.done %s402, 32
        $region48: #{tpu_custom_call.1} parent=43 // pred_fallthru
          _
        // Predicated region
        $region49: #{tpu_custom_call.1} parent=43 // pred_check
          %p407 = pneg %p126
        $region50: #{tpu_custom_call.1} parent=43 // pred_check_branch
          %409 = sbr.rel (%p407) target = $region52
        $region51: #{tpu_custom_call.1} parent=43 // pred_region
          %s410 = sand.u32 %s111, 1
          %s411 = scalar_lea.sflag [#allocation7], %s410
          %s412 = sand.u32 %s111, 1
          %s413 = smul.addr %s412, 2
          %s414 = scalar_lea.vmem [#allocation6], %s413
          %415 = dma.done %s411, 32
        $region52: #{tpu_custom_call.1} parent=43 // pred_fallthru
          _
      $region44: #{tpu_custom_call.1} parent=5 // pred_fallthru
        _
    $region6: #{tpu_custom_call.1} parent=1 // loop_footer
      %s22 = sadd.s32 1, %s18
    $region7: #{tpu_custom_call.1} parent=1 // loop_footer_branch
      %17 = sbr.rel target = $region3
    $region8: #{tpu_custom_call.1} parent=1 // loop_exit
      _
    %416 = vsyncpa [#allocation3], 1
    %s417 = scalar_lea.sflag [#allocation3], 1
    %418 = vsyncpa %s417, 1
    %419 = vsyncpa [#allocation4], 1
    %s420 = scalar_lea.sflag [#allocation4], 1
    %421 = vsyncpa %s420, 1
    %422 = vsyncpa [#allocation7], 1
    %s423 = scalar_lea.sflag [#allocation7], 1
    %424 = vsyncpa %s423, 1

</llo_original>
